<compile_context>
chip_gen: v7x
topology: tpu7x:2x2x1
jax: 0.10.0
libtpu: 0.0.40
codegen_flags: <defaults>
</compile_context>

<pallas_src>
import functools

import jax
import jax.numpy as jnp
from jax import lax
from jax.experimental import pallas as pl
from jax.experimental.pallas import tpu as pltpu

LANE = 128        # vreg lane width
BLOCK_B = 32      # default batch rows per grid step (multiple of 8)

# ---- one-time capability / hardware queries (hoisted out of the call path) ----
_BUFFERED = getattr(pl, "Buffered", None)      # single-buffer the resident table

def _query_vmem_cap():
    try:
        return int(pltpu.get_tpu_info().vmem_capacity_bytes)
    except Exception:
        return 64 << 20          # conservative fallback (v7x-sized)

_VMEM_CAP = _query_vmem_cap()
_VMEM_HEADROOM = 4 << 20


def _tree_max(rows):
    """Pairwise tree-reduction with jnp.maximum (keeps gathers independent)."""
    while len(rows) > 1:
        nxt = [jnp.maximum(rows[i], rows[i + 1]) for i in range(0, len(rows) - 1, 2)]
        if len(rows) % 2:
            nxt.append(rows[-1])
        rows = nxt
    return rows[0]


def _bow_encoder_kernel(ids_ref, emb_ref, out_ref, *, block_b, seq_len, group):
    """Encode `block_b` batch rows per grid step.

    ids_ref : SMEM (B_pad * S,) int32   scalar-prefetch ref (flattened ids)
    emb_ref : VMEM (V, E_pad)           full embedding table (resident)
    out_ref : VMEM (block_b, E_pad)     this step's output tile
    """
    row0 = pl.program_id(0) * block_b

    def gather(base, s):
        # one embedding row for token ids[base + s] -> (1, E_pad)
        return emb_ref[pl.ds(ids_ref[base + s], 1), :]

    for r in range(block_b):                      # static unroll over the block
        base = (row0 + r) * seq_len

        if seq_len <= 2 * group:
            # short sequence: fully unrolled independent gathers + tree max
            acc = _tree_max([gather(base, s) for s in range(seq_len)])
        else:
            # long sequence: unrolled groups under a (partially unrolled) loop;
            # accumulator seeded from the first group (no -inf fill).
            n_groups, rem = divmod(seq_len, group)
            acc = _tree_max([gather(base, s) for s in range(group)])

            def body(g, acc, base=base):
                s0 = g * group
                return jnp.maximum(
                    acc, _tree_max([gather(base, s0 + j) for j in range(group)]))

            acc = lax.fori_loop(1, n_groups, body, acc,
                                unroll=min(4, n_groups - 1))
            if rem:
                tail = _tree_max(
                    [gather(base, n_groups * group + j) for j in range(rem)])
                acc = jnp.maximum(acc, tail)

        # store each pooled row directly (no concat -> no vreg blow-up)
        out_ref[pl.ds(r, 1), :] = jnp.tanh(acc.astype(jnp.float32)).astype(out_ref.dtype)


@functools.lru_cache(maxsize=None)
def _build_call(b_pad, seq_len, vocab, e_pad, block_b, dtype_name):
    # cap live gathered rows per group at ~32 vregs
    vregs_per_row = max(1, e_pad // LANE)
    group = max(4, min(16, 32 // vregs_per_row))

    kernel = functools.partial(_bow_encoder_kernel,
                               block_b=block_b, seq_len=seq_len, group=group)

    emb_kwargs = {}
    table_bufs = 2
    if _BUFFERED is not None:
        # Constant index_map -> double-buffering the table block is pure VMEM waste.
        emb_kwargs["pipeline_mode"] = _BUFFERED(1)
        table_bufs = 1
    emb_spec = pl.BlockSpec((vocab, e_pad), lambda b, ids: (0, 0), **emb_kwargs)

    itemsize = jnp.dtype(dtype_name).itemsize
    needed = (table_bufs * vocab * e_pad * itemsize   # resident table
              + 2 * block_b * e_pad * 4               # double-buffered output tile
              + (2 << 20))                            # headroom
    vmem_limit = int(min(max(32 << 20, needed), _VMEM_CAP - _VMEM_HEADROOM))

    return pl.pallas_call(
        kernel,
        out_shape=jax.ShapeDtypeStruct((b_pad, e_pad), jnp.float32),
        grid_spec=pltpu.PrefetchScalarGridSpec(
            num_scalar_prefetch=1,                 # flattened ids -> SMEM
            grid=(b_pad // block_b,),
            in_specs=[emb_spec],
            out_specs=pl.BlockSpec((block_b, e_pad), lambda b, ids: (b, 0)),
        ),
        compiler_params=pltpu.CompilerParams(
            dimension_semantics=("parallel",),     # each step owns a distinct output tile
            vmem_limit_bytes=vmem_limit,
        ),
    )


def bow_encoder(ids, emb_table, *, block_b=BLOCK_B):
    """tanh(max_s emb[ids[b, s]]) per batch row b (dropout in eval mode)."""
    ids = jnp.asarray(ids, jnp.int32)
    emb_table = jnp.asarray(emb_table)
    B, S = ids.shape
    V, E = emb_table.shape
    assert S >= 1, "sequence length must be >= 1 (matches F.max_pool1d requirement)"

    # clamp untrusted ids so the in-kernel dynamic row gather can never go OOB
    ids = jnp.clip(ids, 0, V - 1)

    # batch tiling: sublane-aligned, not larger than the padded batch, and
    # split so the parallel grid has >= 2 steps when B > 8 (v7x megacore).
    block_b = max(8, (block_b // 8) * 8)
    block_b = min(block_b, -(-B // 8) * 8)
    if B > 8:
        block_b = min(block_b, (((B + 1) // 2) + 7) // 8 * 8)

    e_pad = -(-E // LANE) * LANE              # lane-dense output (pad E to mult of 128)
    b_pad = -(-B // block_b) * block_b

    if e_pad != E:
        emb_table = jnp.pad(emb_table, ((0, 0), (0, e_pad - E)))
    if b_pad != B:
        ids = jnp.pad(ids, ((0, b_pad - B), (0, 0)))   # padded rows gather token 0

    ids_flat = ids.reshape(-1)                # 1D SMEM layout (bounded padding)

    call = _build_call(b_pad, S, V, e_pad, block_b, jnp.dtype(emb_table.dtype).name)
    enc = call(ids_flat, emb_table)
    return enc[:B, :E]


if __name__ == "__main__":
    key = jax.random.PRNGKey(0)
    encode = jax.jit(bow_encoder)

    # Config 1: lane-aligned hidden size, batch smaller than one batch tile.
    vocab, emb, batch, seq = 50, 128, 2, 8
    k1, k2, key = jax.random.split(key, 3)
    table = jax.random.normal(k1, (vocab, emb), dtype=jnp.float32)   # nn.Embedding ~ N(0,1)
    ids = jax.random.randint(k2, (batch, seq), 0, vocab, dtype=jnp.int32)
    enc = jax.block_until_ready(encode(ids, table))
    ref = jnp.tanh(jnp.max(table[ids], axis=1))
    assert enc.shape == (batch, emb)
    assert jnp.allclose(enc, ref, atol=1e-5), "mismatch vs reference (config 1)"

    # Config 2: non-multiple-of-128 hidden size and a batch spanning 2 grid steps
    # (exercises E/B padding, grid > 1 and the parallel batch axis).
    vocab, emb, batch, seq = 37, 100, 10, 7
    k1, k2, key = jax.random.split(key, 3)
    table = jax.random.normal(k1, (vocab, emb), dtype=jnp.float32)
    ids = jax.random.randint(k2, (batch, seq), 0, vocab, dtype=jnp.int32)
    enc = jax.block_until_ready(encode(ids, table))
    ref = jnp.tanh(jnp.max(table[ids], axis=1))
    assert enc.shape == (batch, emb)
    assert jnp.allclose(enc, ref, atol=1e-5), "mismatch vs reference (config 2)"

    print("KERNEL_OK")
</pallas_src>

<mosaic_0001>
module attributes {stable_mosaic.version = 11 : i64} {
  func.func @_bow_encoder_kernel(%arg0: i32, %arg1: memref<64xi32, #tpu.memory_space<smem>>, %arg2: memref<50x128xf32, #tpu.memory_space<vmem>>, %arg3: memref<8x128xf32, #tpu.memory_space<vmem>>) attributes {dimension_semantics = [#tpu.dimension_semantics<parallel>], iteration_bounds = array<i64: 1>, scalar_prefetch = 1 : i64, scratch_operands = 0 : i64, tpu.core_type = #tpu.core_type<tc>, window_params = [{pipeline_mode = #tpu.pipeline_mode<synchronous>, transform_indices = @transform_0, window_bounds = array<i64: 50, 128>}, {transform_indices = @transform_1, window_bounds = array<i64: 8, 128>}]} {
    %c8_i32 = arith.constant 8 : i32
    %0 = arith.muli %arg0, %c8_i32 : i32
    %c0_i32 = arith.constant 0 : i32
    %1 = arith.addi %0, %c0_i32 : i32
    %c8_i32_0 = arith.constant 8 : i32
    %2 = arith.muli %1, %c8_i32_0 : i32
    %c0_i32_1 = arith.constant 0 : i32
    %3 = arith.addi %2, %c0_i32_1 : i32
    %4 = arith.index_cast %3 : i32 to index
    %5 = memref.load %arg1[%4] : memref<64xi32, #tpu.memory_space<smem>>
    %6 = arith.index_cast %5 : i32 to index
    %c0 = arith.constant 0 : index
    %7 = vector.load %arg2[%6, %c0] : memref<50x128xf32, #tpu.memory_space<vmem>>, vector<1x128xf32>
    %c1_i32 = arith.constant 1 : i32
    %8 = arith.addi %2, %c1_i32 : i32
    %9 = arith.index_cast %8 : i32 to index
    %10 = memref.load %arg1[%9] : memref<64xi32, #tpu.memory_space<smem>>
    %11 = arith.index_cast %10 : i32 to index
    %c0_2 = arith.constant 0 : index
    %12 = vector.load %arg2[%11, %c0_2] : memref<50x128xf32, #tpu.memory_space<vmem>>, vector<1x128xf32>
    %c2_i32 = arith.constant 2 : i32
    %13 = arith.addi %2, %c2_i32 : i32
    %14 = arith.index_cast %13 : i32 to index
    %15 = memref.load %arg1[%14] : memref<64xi32, #tpu.memory_space<smem>>
    %16 = arith.index_cast %15 : i32 to index
    %c0_3 = arith.constant 0 : index
    %17 = vector.load %arg2[%16, %c0_3] : memref<50x128xf32, #tpu.memory_space<vmem>>, vector<1x128xf32>
    %c3_i32 = arith.constant 3 : i32
    %18 = arith.addi %2, %c3_i32 : i32
    %19 = arith.index_cast %18 : i32 to index
    %20 = memref.load %arg1[%19] : memref<64xi32, #tpu.memory_space<smem>>
    %21 = arith.index_cast %20 : i32 to index
    %c0_4 = arith.constant 0 : index
    %22 = vector.load %arg2[%21, %c0_4] : memref<50x128xf32, #tpu.memory_space<vmem>>, vector<1x128xf32>
    %c4_i32 = arith.constant 4 : i32
    %23 = arith.addi %2, %c4_i32 : i32
    %24 = arith.index_cast %23 : i32 to index
    %25 = memref.load %arg1[%24] : memref<64xi32, #tpu.memory_space<smem>>
    %26 = arith.index_cast %25 : i32 to index
    %c0_5 = arith.constant 0 : index
    %27 = vector.load %arg2[%26, %c0_5] : memref<50x128xf32, #tpu.memory_space<vmem>>, vector<1x128xf32>
    %c5_i32 = arith.constant 5 : i32
    %28 = arith.addi %2, %c5_i32 : i32
    %29 = arith.index_cast %28 : i32 to index
    %30 = memref.load %arg1[%29] : memref<64xi32, #tpu.memory_space<smem>>
    %31 = arith.index_cast %30 : i32 to index
    %c0_6 = arith.constant 0 : index
    %32 = vector.load %arg2[%31, %c0_6] : memref<50x128xf32, #tpu.memory_space<vmem>>, vector<1x128xf32>
    %c6_i32 = arith.constant 6 : i32
    %33 = arith.addi %2, %c6_i32 : i32
    %34 = arith.index_cast %33 : i32 to index
    %35 = memref.load %arg1[%34] : memref<64xi32, #tpu.memory_space<smem>>
    %36 = arith.index_cast %35 : i32 to index
    %c0_7 = arith.constant 0 : index
    %37 = vector.load %arg2[%36, %c0_7] : memref<50x128xf32, #tpu.memory_space<vmem>>, vector<1x128xf32>
    %c7_i32 = arith.constant 7 : i32
    %38 = arith.addi %2, %c7_i32 : i32
    %39 = arith.index_cast %38 : i32 to index
    %40 = memref.load %arg1[%39] : memref<64xi32, #tpu.memory_space<smem>>
    %41 = arith.index_cast %40 : i32 to index
    %c0_8 = arith.constant 0 : index
    %42 = vector.load %arg2[%41, %c0_8] : memref<50x128xf32, #tpu.memory_space<vmem>>, vector<1x128xf32>
    %43 = arith.maximumf %7, %12 : vector<1x128xf32>
    %44 = arith.maximumf %17, %22 : vector<1x128xf32>
    %45 = arith.maximumf %27, %32 : vector<1x128xf32>
    %46 = arith.maximumf %37, %42 : vector<1x128xf32>
    %47 = arith.maximumf %43, %44 : vector<1x128xf32>
    %48 = arith.maximumf %45, %46 : vector<1x128xf32>
    %49 = arith.maximumf %47, %48 : vector<1x128xf32>
    %50 = math.tanh %49 : vector<1x128xf32>
    %c0_9 = arith.constant 0 : index
    %c0_10 = arith.constant 0 : index
    %51 = vector.load %arg3[%c0_9, %c0_10] : memref<8x128xf32, #tpu.memory_space<vmem>>, vector<1x128xf32>
    tpu.vector_store %arg3[%c0_9, %c0_10], %50 {strides = array<i32>} : memref<8x128xf32, #tpu.memory_space<vmem>>, vector<1x128xf32>,
    %c1_i32_11 = arith.constant 1 : i32
    %52 = arith.addi %0, %c1_i32_11 : i32
    %c8_i32_12 = arith.constant 8 : i32
    %53 = arith.muli %52, %c8_i32_12 : i32
    %c0_i32_13 = arith.constant 0 : i32
    %54 = arith.addi %53, %c0_i32_13 : i32
    %55 = arith.index_cast %54 : i32 to index
    %56 = memref.load %arg1[%55] : memref<64xi32, #tpu.memory_space<smem>>
    %57 = arith.index_cast %56 : i32 to index
    %c0_14 = arith.constant 0 : index
    %58 = vector.load %arg2[%57, %c0_14] : memref<50x128xf32, #tpu.memory_space<vmem>>, vector<1x128xf32>
    %c1_i32_15 = arith.constant 1 : i32
    %59 = arith.addi %53, %c1_i32_15 : i32
    %60 = arith.index_cast %59 : i32 to index
    %61 = memref.load %arg1[%60] : memref<64xi32, #tpu.memory_space<smem>>
    %62 = arith.index_cast %61 : i32 to index
    %c0_16 = arith.constant 0 : index
    %63 = vector.load %arg2[%62, %c0_16] : memref<50x128xf32, #tpu.memory_space<vmem>>, vector<1x128xf32>
    %c2_i32_17 = arith.constant 2 : i32
    %64 = arith.addi %53, %c2_i32_17 : i32
    %65 = arith.index_cast %64 : i32 to index
    %66 = memref.load %arg1[%65] : memref<64xi32, #tpu.memory_space<smem>>
    %67 = arith.index_cast %66 : i32 to index
    %c0_18 = arith.constant 0 : index
    %68 = vector.load %arg2[%67, %c0_18] : memref<50x128xf32, #tpu.memory_space<vmem>>, vector<1x128xf32>
    %c3_i32_19 = arith.constant 3 : i32
    %69 = arith.addi %53, %c3_i32_19 : i32
    %70 = arith.index_cast %69 : i32 to index
    %71 = memref.load %arg1[%70] : memref<64xi32, #tpu.memory_space<smem>>
    %72 = arith.index_cast %71 : i32 to index
    %c0_20 = arith.constant 0 : index
    %73 = vector.load %arg2[%72, %c0_20] : memref<50x128xf32, #tpu.memory_space<vmem>>, vector<1x128xf32>
    %c4_i32_21 = arith.constant 4 : i32
    %74 = arith.addi %53, %c4_i32_21 : i32
    %75 = arith.index_cast %74 : i32 to index
    %76 = memref.load %arg1[%75] : memref<64xi32, #tpu.memory_space<smem>>
    %77 = arith.index_cast %76 : i32 to index
    %c0_22 = arith.constant 0 : index
    %78 = vector.load %arg2[%77, %c0_22] : memref<50x128xf32, #tpu.memory_space<vmem>>, vector<1x128xf32>
    %c5_i32_23 = arith.constant 5 : i32
    %79 = arith.addi %53, %c5_i32_23 : i32
    %80 = arith.index_cast %79 : i32 to index
    %81 = memref.load %arg1[%80] : memref<64xi32, #tpu.memory_space<smem>>
    %82 = arith.index_cast %81 : i32 to index
    %c0_24 = arith.constant 0 : index
    %83 = vector.load %arg2[%82, %c0_24] : memref<50x128xf32, #tpu.memory_space<vmem>>, vector<1x128xf32>
    %c6_i32_25 = arith.constant 6 : i32
    %84 = arith.addi %53, %c6_i32_25 : i32
    %85 = arith.index_cast %84 : i32 to index
    %86 = memref.load %arg1[%85] : memref<64xi32, #tpu.memory_space<smem>>
    %87 = arith.index_cast %86 : i32 to index
    %c0_26 = arith.constant 0 : index
    %88 = vector.load %arg2[%87, %c0_26] : memref<50x128xf32, #tpu.memory_space<vmem>>, vector<1x128xf32>
    %c7_i32_27 = arith.constant 7 : i32
    %89 = arith.addi %53, %c7_i32_27 : i32
    %90 = arith.index_cast %89 : i32 to index
    %91 = memref.load %arg1[%90] : memref<64xi32, #tpu.memory_space<smem>>
    %92 = arith.index_cast %91 : i32 to index
    %c0_28 = arith.constant 0 : index
    %93 = vector.load %arg2[%92, %c0_28] : memref<50x128xf32, #tpu.memory_space<vmem>>, vector<1x128xf32>
    %94 = arith.maximumf %58, %63 : vector<1x128xf32>
    %95 = arith.maximumf %68, %73 : vector<1x128xf32>
    %96 = arith.maximumf %78, %83 : vector<1x128xf32>
    %97 = arith.maximumf %88, %93 : vector<1x128xf32>
    %98 = arith.maximumf %94, %95 : vector<1x128xf32>
    %99 = arith.maximumf %96, %97 : vector<1x128xf32>
    %100 = arith.maximumf %98, %99 : vector<1x128xf32>
    %101 = math.tanh %100 : vector<1x128xf32>
    %c1 = arith.constant 1 : index
    %c0_29 = arith.constant 0 : index
    %102 = vector.load %arg3[%c1, %c0_29] : memref<8x128xf32, #tpu.memory_space<vmem>>, vector<1x128xf32>
    tpu.vector_store %arg3[%c1, %c0_29], %101 {strides = array<i32>} : memref<8x128xf32, #tpu.memory_space<vmem>>, vector<1x128xf32>,
    %c2_i32_30 = arith.constant 2 : i32
    %103 = arith.addi %0, %c2_i32_30 : i32
    %c8_i32_31 = arith.constant 8 : i32
    %104 = arith.muli %103, %c8_i32_31 : i32
    %c0_i32_32 = arith.constant 0 : i32
    %105 = arith.addi %104, %c0_i32_32 : i32
    %106 = arith.index_cast %105 : i32 to index
    %107 = memref.load %arg1[%106] : memref<64xi32, #tpu.memory_space<smem>>
    %108 = arith.index_cast %107 : i32 to index
    %c0_33 = arith.constant 0 : index
    %109 = vector.load %arg2[%108, %c0_33] : memref<50x128xf32, #tpu.memory_space<vmem>>, vector<1x128xf32>
    %c1_i32_34 = arith.constant 1 : i32
    %110 = arith.addi %104, %c1_i32_34 : i32
    %111 = arith.index_cast %110 : i32 to index
    %112 = memref.load %arg1[%111] : memref<64xi32, #tpu.memory_space<smem>>
    %113 = arith.index_cast %112 : i32 to index
    %c0_35 = arith.constant 0 : index
    %114 = vector.load %arg2[%113, %c0_35] : memref<50x128xf32, #tpu.memory_space<vmem>>, vector<1x128xf32>
    %c2_i32_36 = arith.constant 2 : i32
    %115 = arith.addi %104, %c2_i32_36 : i32
    %116 = arith.index_cast %115 : i32 to index
    %117 = memref.load %arg1[%116] : memref<64xi32, #tpu.memory_space<smem>>
    %118 = arith.index_cast %117 : i32 to index
    %c0_37 = arith.constant 0 : index
    %119 = vector.load %arg2[%118, %c0_37] : memref<50x128xf32, #tpu.memory_space<vmem>>, vector<1x128xf32>
    %c3_i32_38 = arith.constant 3 : i32
    %120 = arith.addi %104, %c3_i32_38 : i32
    %121 = arith.index_cast %120 : i32 to index
    %122 = memref.load %arg1[%121] : memref<64xi32, #tpu.memory_space<smem>>
    %123 = arith.index_cast %122 : i32 to index
    %c0_39 = arith.constant 0 : index
    %124 = vector.load %arg2[%123, %c0_39] : memref<50x128xf32, #tpu.memory_space<vmem>>, vector<1x128xf32>
    %c4_i32_40 = arith.constant 4 : i32
    %125 = arith.addi %104, %c4_i32_40 : i32
    %126 = arith.index_cast %125 : i32 to index
    %127 = memref.load %arg1[%126] : memref<64xi32, #tpu.memory_space<smem>>
    %128 = arith.index_cast %127 : i32 to index
    %c0_41 = arith.constant 0 : index
    %129 = vector.load %arg2[%128, %c0_41] : memref<50x128xf32, #tpu.memory_space<vmem>>, vector<1x128xf32>
    %c5_i32_42 = arith.constant 5 : i32
    %130 = arith.addi %104, %c5_i32_42 : i32
    %131 = arith.index_cast %130 : i32 to index
    %132 = memref.load %arg1[%131] : memref<64xi32, #tpu.memory_space<smem>>
    %133 = arith.index_cast %132 : i32 to index
    %c0_43 = arith.constant 0 : index
    %134 = vector.load %arg2[%133, %c0_43] : memref<50x128xf32, #tpu.memory_space<vmem>>, vector<1x128xf32>
    %c6_i32_44 = arith.constant 6 : i32
    %135 = arith.addi %104, %c6_i32_44 : i32
    %136 = arith.index_cast %135 : i32 to index
    %137 = memref.load %arg1[%136] : memref<64xi32, #tpu.memory_space<smem>>
    %138 = arith.index_cast %137 : i32 to index
    %c0_45 = arith.constant 0 : index
    %139 = vector.load %arg2[%138, %c0_45] : memref<50x128xf32, #tpu.memory_space<vmem>>, vector<1x128xf32>
    %c7_i32_46 = arith.constant 7 : i32
    %140 = arith.addi %104, %c7_i32_46 : i32
    %141 = arith.index_cast %140 : i32 to index
    %142 = memref.load %arg1[%141] : memref<64xi32, #tpu.memory_space<smem>>
    %143 = arith.index_cast %142 : i32 to index
    %c0_47 = arith.constant 0 : index
    %144 = vector.load %arg2[%143, %c0_47] : memref<50x128xf32, #tpu.memory_space<vmem>>, vector<1x128xf32>
    %145 = arith.maximumf %109, %114 : vector<1x128xf32>
    %146 = arith.maximumf %119, %124 : vector<1x128xf32>
    %147 = arith.maximumf %129, %134 : vector<1x128xf32>
    %148 = arith.maximumf %139, %144 : vector<1x128xf32>
    %149 = arith.maximumf %145, %146 : vector<1x128xf32>
    %150 = arith.maximumf %147, %148 : vector<1x128xf32>
    %151 = arith.maximumf %149, %150 : vector<1x128xf32>
    %152 = math.tanh %151 : vector<1x128xf32>
    %c2 = arith.constant 2 : index
    %c0_48 = arith.constant 0 : index
    %153 = vector.load %arg3[%c2, %c0_48] : memref<8x128xf32, #tpu.memory_space<vmem>>, vector<1x128xf32>
    tpu.vector_store %arg3[%c2, %c0_48], %152 {strides = array<i32>} : memref<8x128xf32, #tpu.memory_space<vmem>>, vector<1x128xf32>,
    %c3_i32_49 = arith.constant 3 : i32
    %154 = arith.addi %0, %c3_i32_49 : i32
    %c8_i32_50 = arith.constant 8 : i32
    %155 = arith.muli %154, %c8_i32_50 : i32
    %c0_i32_51 = arith.constant 0 : i32
    %156 = arith.addi %155, %c0_i32_51 : i32
    %157 = arith.index_cast %156 : i32 to index
    %158 = memref.load %arg1[%157] : memref<64xi32, #tpu.memory_space<smem>>
    %159 = arith.index_cast %158 : i32 to index
    %c0_52 = arith.constant 0 : index
    %160 = vector.load %arg2[%159, %c0_52] : memref<50x128xf32, #tpu.memory_space<vmem>>, vector<1x128xf32>
    %c1_i32_53 = arith.constant 1 : i32
    %161 = arith.addi %155, %c1_i32_53 : i32
    %162 = arith.index_cast %161 : i32 to index
    %163 = memref.load %arg1[%162] : memref<64xi32, #tpu.memory_space<smem>>
    %164 = arith.index_cast %163 : i32 to index
    %c0_54 = arith.constant 0 : index
    %165 = vector.load %arg2[%164, %c0_54] : memref<50x128xf32, #tpu.memory_space<vmem>>, vector<1x128xf32>
    %c2_i32_55 = arith.constant 2 : i32
    %166 = arith.addi %155, %c2_i32_55 : i32
    %167 = arith.index_cast %166 : i32 to index
    %168 = memref.load %arg1[%167] : memref<64xi32, #tpu.memory_space<smem>>
    %169 = arith.index_cast %168 : i32 to index
    %c0_56 = arith.constant 0 : index
    %170 = vector.load %arg2[%169, %c0_56] : memref<50x128xf32, #tpu.memory_space<vmem>>, vector<1x128xf32>
    %c3_i32_57 = arith.constant 3 : i32
    %171 = arith.addi %155, %c3_i32_57 : i32
    %172 = arith.index_cast %171 : i32 to index
    %173 = memref.load %arg1[%172] : memref<64xi32, #tpu.memory_space<smem>>
    %174 = arith.index_cast %173 : i32 to index
    %c0_58 = arith.constant 0 : index
    %175 = vector.load %arg2[%174, %c0_58] : memref<50x128xf32, #tpu.memory_space<vmem>>, vector<1x128xf32>
    %c4_i32_59 = arith.constant 4 : i32
    %176 = arith.addi %155, %c4_i32_59 : i32
    %177 = arith.index_cast %176 : i32 to index
    %178 = memref.load %arg1[%177] : memref<64xi32, #tpu.memory_space<smem>>
    %179 = arith.index_cast %178 : i32 to index
    %c0_60 = arith.constant 0 : index
    %180 = vector.load %arg2[%179, %c0_60] : memref<50x128xf32, #tpu.memory_space<vmem>>, vector<1x128xf32>
    %c5_i32_61 = arith.constant 5 : i32
    %181 = arith.addi %155, %c5_i32_61 : i32
    %182 = arith.index_cast %181 : i32 to index
    %183 = memref.load %arg1[%182] : memref<64xi32, #tpu.memory_space<smem>>
    %184 = arith.index_cast %183 : i32 to index
    %c0_62 = arith.constant 0 : index
    %185 = vector.load %arg2[%184, %c0_62] : memref<50x128xf32, #tpu.memory_space<vmem>>, vector<1x128xf32>
    %c6_i32_63 = arith.constant 6 : i32
    %186 = arith.addi %155, %c6_i32_63 : i32
    %187 = arith.index_cast %186 : i32 to index
    %188 = memref.load %arg1[%187] : memref<64xi32, #tpu.memory_space<smem>>
    %189 = arith.index_cast %188 : i32 to index
    %c0_64 = arith.constant 0 : index
    %190 = vector.load %arg2[%189, %c0_64] : memref<50x128xf32, #tpu.memory_space<vmem>>, vector<1x128xf32>
    %c7_i32_65 = arith.constant 7 : i32
    %191 = arith.addi %155, %c7_i32_65 : i32
    %192 = arith.index_cast %191 : i32 to index
    %193 = memref.load %arg1[%192] : memref<64xi32, #tpu.memory_space<smem>>
    %194 = arith.index_cast %193 : i32 to index
    %c0_66 = arith.constant 0 : index
    %195 = vector.load %arg2[%194, %c0_66] : memref<50x128xf32, #tpu.memory_space<vmem>>, vector<1x128xf32>
    %196 = arith.maximumf %160, %165 : vector<1x128xf32>
    %197 = arith.maximumf %170, %175 : vector<1x128xf32>
    %198 = arith.maximumf %180, %185 : vector<1x128xf32>
    %199 = arith.maximumf %190, %195 : vector<1x128xf32>
    %200 = arith.maximumf %196, %197 : vector<1x128xf32>
    %201 = arith.maximumf %198, %199 : vector<1x128xf32>
    %202 = arith.maximumf %200, %201 : vector<1x128xf32>
    %203 = math.tanh %202 : vector<1x128xf32>
    %c3 = arith.constant 3 : index
    %c0_67 = arith.constant 0 : index
    %204 = vector.load %arg3[%c3, %c0_67] : memref<8x128xf32, #tpu.memory_space<vmem>>, vector<1x128xf32>
    tpu.vector_store %arg3[%c3, %c0_67], %203 {strides = array<i32>} : memref<8x128xf32, #tpu.memory_space<vmem>>, vector<1x128xf32>,
    %c4_i32_68 = arith.constant 4 : i32
    %205 = arith.addi %0, %c4_i32_68 : i32
    %c8_i32_69 = arith.constant 8 : i32
    %206 = arith.muli %205, %c8_i32_69 : i32
    %c0_i32_70 = arith.constant 0 : i32
    %207 = arith.addi %206, %c0_i32_70 : i32
    %208 = arith.index_cast %207 : i32 to index
    %209 = memref.load %arg1[%208] : memref<64xi32, #tpu.memory_space<smem>>
    %210 = arith.index_cast %209 : i32 to index
    %c0_71 = arith.constant 0 : index
    %211 = vector.load %arg2[%210, %c0_71] : memref<50x128xf32, #tpu.memory_space<vmem>>, vector<1x128xf32>
    %c1_i32_72 = arith.constant 1 : i32
    %212 = arith.addi %206, %c1_i32_72 : i32
    %213 = arith.index_cast %212 : i32 to index
    %214 = memref.load %arg1[%213] : memref<64xi32, #tpu.memory_space<smem>>
    %215 = arith.index_cast %214 : i32 to index
    %c0_73 = arith.constant 0 : index
    %216 = vector.load %arg2[%215, %c0_73] : memref<50x128xf32, #tpu.memory_space<vmem>>, vector<1x128xf32>
    %c2_i32_74 = arith.constant 2 : i32
    %217 = arith.addi %206, %c2_i32_74 : i32
    %218 = arith.index_cast %217 : i32 to index
    %219 = memref.load %arg1[%218] : memref<64xi32, #tpu.memory_space<smem>>
    %220 = arith.index_cast %219 : i32 to index
    %c0_75 = arith.constant 0 : index
    %221 = vector.load %arg2[%220, %c0_75] : memref<50x128xf32, #tpu.memory_space<vmem>>, vector<1x128xf32>
    %c3_i32_76 = arith.constant 3 : i32
    %222 = arith.addi %206, %c3_i32_76 : i32
    %223 = arith.index_cast %222 : i32 to index
    %224 = memref.load %arg1[%223] : memref<64xi32, #tpu.memory_space<smem>>
    %225 = arith.index_cast %224 : i32 to index
    %c0_77 = arith.constant 0 : index
    %226 = vector.load %arg2[%225, %c0_77] : memref<50x128xf32, #tpu.memory_space<vmem>>, vector<1x128xf32>
    %c4_i32_78 = arith.constant 4 : i32
    %227 = arith.addi %206, %c4_i32_78 : i32
    %228 = arith.index_cast %227 : i32 to index
    %229 = memref.load %arg1[%228] : memref<64xi32, #tpu.memory_space<smem>>
    %230 = arith.index_cast %229 : i32 to index
    %c0_79 = arith.constant 0 : index
    %231 = vector.load %arg2[%230, %c0_79] : memref<50x128xf32, #tpu.memory_space<vmem>>, vector<1x128xf32>
    %c5_i32_80 = arith.constant 5 : i32
    %232 = arith.addi %206, %c5_i32_80 : i32
    %233 = arith.index_cast %232 : i32 to index
    %234 = memref.load %arg1[%233] : memref<64xi32, #tpu.memory_space<smem>>
    %235 = arith.index_cast %234 : i32 to index
    %c0_81 = arith.constant 0 : index
    %236 = vector.load %arg2[%235, %c0_81] : memref<50x128xf32, #tpu.memory_space<vmem>>, vector<1x128xf32>
    %c6_i32_82 = arith.constant 6 : i32
    %237 = arith.addi %206, %c6_i32_82 : i32
    %238 = arith.index_cast %237 : i32 to index
    %239 = memref.load %arg1[%238] : memref<64xi32, #tpu.memory_space<smem>>
    %240 = arith.index_cast %239 : i32 to index
    %c0_83 = arith.constant 0 : index
    %241 = vector.load %arg2[%240, %c0_83] : memref<50x128xf32, #tpu.memory_space<vmem>>, vector<1x128xf32>
    %c7_i32_84 = arith.constant 7 : i32
    %242 = arith.addi %206, %c7_i32_84 : i32
    %243 = arith.index_cast %242 : i32 to index
    %244 = memref.load %arg1[%243] : memref<64xi32, #tpu.memory_space<smem>>
    %245 = arith.index_cast %244 : i32 to index
    %c0_85 = arith.constant 0 : index
    %246 = vector.load %arg2[%245, %c0_85] : memref<50x128xf32, #tpu.memory_space<vmem>>, vector<1x128xf32>
    %247 = arith.maximumf %211, %216 : vector<1x128xf32>
    %248 = arith.maximumf %221, %226 : vector<1x128xf32>
    %249 = arith.maximumf %231, %236 : vector<1x128xf32>
    %250 = arith.maximumf %241, %246 : vector<1x128xf32>
    %251 = arith.maximumf %247, %248 : vector<1x128xf32>
    %252 = arith.maximumf %249, %250 : vector<1x128xf32>
    %253 = arith.maximumf %251, %252 : vector<1x128xf32>
    %254 = math.tanh %253 : vector<1x128xf32>
    %c4 = arith.constant 4 : index
    %c0_86 = arith.constant 0 : index
    %255 = vector.load %arg3[%c4, %c0_86] : memref<8x128xf32, #tpu.memory_space<vmem>>, vector<1x128xf32>
    tpu.vector_store %arg3[%c4, %c0_86], %254 {strides = array<i32>} : memref<8x128xf32, #tpu.memory_space<vmem>>, vector<1x128xf32>,
    %c5_i32_87 = arith.constant 5 : i32
    %256 = arith.addi %0, %c5_i32_87 : i32
    %c8_i32_88 = arith.constant 8 : i32
    %257 = arith.muli %256, %c8_i32_88 : i32
    %c0_i32_89 = arith.constant 0 : i32
    %258 = arith.addi %257, %c0_i32_89 : i32
    %259 = arith.index_cast %258 : i32 to index
    %260 = memref.load %arg1[%259] : memref<64xi32, #tpu.memory_space<smem>>
    %261 = arith.index_cast %260 : i32 to index
    %c0_90 = arith.constant 0 : index
    %262 = vector.load %arg2[%261, %c0_90] : memref<50x128xf32, #tpu.memory_space<vmem>>, vector<1x128xf32>
    %c1_i32_91 = arith.constant 1 : i32
    %263 = arith.addi %257, %c1_i32_91 : i32
    %264 = arith.index_cast %263 : i32 to index
    %265 = memref.load %arg1[%264] : memref<64xi32, #tpu.memory_space<smem>>
    %266 = arith.index_cast %265 : i32 to index
    %c0_92 = arith.constant 0 : index
    %267 = vector.load %arg2[%266, %c0_92] : memref<50x128xf32, #tpu.memory_space<vmem>>, vector<1x128xf32>
    %c2_i32_93 = arith.constant 2 : i32
    %268 = arith.addi %257, %c2_i32_93 : i32
    %269 = arith.index_cast %268 : i32 to index
    %270 = memref.load %arg1[%269] : memref<64xi32, #tpu.memory_space<smem>>
    %271 = arith.index_cast %270 : i32 to index
    %c0_94 = arith.constant 0 : index
    %272 = vector.load %arg2[%271, %c0_94] : memref<50x128xf32, #tpu.memory_space<vmem>>, vector<1x128xf32>
    %c3_i32_95 = arith.constant 3 : i32
    %273 = arith.addi %257, %c3_i32_95 : i32
    %274 = arith.index_cast %273 : i32 to index
    %275 = memref.load %arg1[%274] : memref<64xi32, #tpu.memory_space<smem>>
    %276 = arith.index_cast %275 : i32 to index
    %c0_96 = arith.constant 0 : index
    %277 = vector.load %arg2[%276, %c0_96] : memref<50x128xf32, #tpu.memory_space<vmem>>, vector<1x128xf32>
    %c4_i32_97 = arith.constant 4 : i32
    %278 = arith.addi %257, %c4_i32_97 : i32
    %279 = arith.index_cast %278 : i32 to index
    %280 = memref.load %arg1[%279] : memref<64xi32, #tpu.memory_space<smem>>
    %281 = arith.index_cast %280 : i32 to index
    %c0_98 = arith.constant 0 : index
    %282 = vector.load %arg2[%281, %c0_98] : memref<50x128xf32, #tpu.memory_space<vmem>>, vector<1x128xf32>
    %c5_i32_99 = arith.constant 5 : i32
    %283 = arith.addi %257, %c5_i32_99 : i32
    %284 = arith.index_cast %283 : i32 to index
    %285 = memref.load %arg1[%284] : memref<64xi32, #tpu.memory_space<smem>>
    %286 = arith.index_cast %285 : i32 to index
    %c0_100 = arith.constant 0 : index
    %287 = vector.load %arg2[%286, %c0_100] : memref<50x128xf32, #tpu.memory_space<vmem>>, vector<1x128xf32>
    %c6_i32_101 = arith.constant 6 : i32
    %288 = arith.addi %257, %c6_i32_101 : i32
    %289 = arith.index_cast %288 : i32 to index
    %290 = memref.load %arg1[%289] : memref<64xi32, #tpu.memory_space<smem>>
    %291 = arith.index_cast %290 : i32 to index
    %c0_102 = arith.constant 0 : index
    %292 = vector.load %arg2[%291, %c0_102] : memref<50x128xf32, #tpu.memory_space<vmem>>, vector<1x128xf32>
    %c7_i32_103 = arith.constant 7 : i32
    %293 = arith.addi %257, %c7_i32_103 : i32
    %294 = arith.index_cast %293 : i32 to index
    %295 = memref.load %arg1[%294] : memref<64xi32, #tpu.memory_space<smem>>
    %296 = arith.index_cast %295 : i32 to index
    %c0_104 = arith.constant 0 : index
    %297 = vector.load %arg2[%296, %c0_104] : memref<50x128xf32, #tpu.memory_space<vmem>>, vector<1x128xf32>
    %298 = arith.maximumf %262, %267 : vector<1x128xf32>
    %299 = arith.maximumf %272, %277 : vector<1x128xf32>
    %300 = arith.maximumf %282, %287 : vector<1x128xf32>
    %301 = arith.maximumf %292, %297 : vector<1x128xf32>
    %302 = arith.maximumf %298, %299 : vector<1x128xf32>
    %303 = arith.maximumf %300, %301 : vector<1x128xf32>
    %304 = arith.maximumf %302, %303 : vector<1x128xf32>
    %305 = math.tanh %304 : vector<1x128xf32>
    %c5 = arith.constant 5 : index
    %c0_105 = arith.constant 0 : index
    %306 = vector.load %arg3[%c5, %c0_105] : memref<8x128xf32, #tpu.memory_space<vmem>>, vector<1x128xf32>
    tpu.vector_store %arg3[%c5, %c0_105], %305 {strides = array<i32>} : memref<8x128xf32, #tpu.memory_space<vmem>>, vector<1x128xf32>,
    %c6_i32_106 = arith.constant 6 : i32
    %307 = arith.addi %0, %c6_i32_106 : i32
    %c8_i32_107 = arith.constant 8 : i32
    %308 = arith.muli %307, %c8_i32_107 : i32
    %c0_i32_108 = arith.constant 0 : i32
    %309 = arith.addi %308, %c0_i32_108 : i32
    %310 = arith.index_cast %309 : i32 to index
    %311 = memref.load %arg1[%310] : memref<64xi32, #tpu.memory_space<smem>>
    %312 = arith.index_cast %311 : i32 to index
    %c0_109 = arith.constant 0 : index
    %313 = vector.load %arg2[%312, %c0_109] : memref<50x128xf32, #tpu.memory_space<vmem>>, vector<1x128xf32>
    %c1_i32_110 = arith.constant 1 : i32
    %314 = arith.addi %308, %c1_i32_110 : i32
    %315 = arith.index_cast %314 : i32 to index
    %316 = memref.load %arg1[%315] : memref<64xi32, #tpu.memory_space<smem>>
    %317 = arith.index_cast %316 : i32 to index
    %c0_111 = arith.constant 0 : index
    %318 = vector.load %arg2[%317, %c0_111] : memref<50x128xf32, #tpu.memory_space<vmem>>, vector<1x128xf32>
    %c2_i32_112 = arith.constant 2 : i32
    %319 = arith.addi %308, %c2_i32_112 : i32
    %320 = arith.index_cast %319 : i32 to index
    %321 = memref.load %arg1[%320] : memref<64xi32, #tpu.memory_space<smem>>
    %322 = arith.index_cast %321 : i32 to index
    %c0_113 = arith.constant 0 : index
    %323 = vector.load %arg2[%322, %c0_113] : memref<50x128xf32, #tpu.memory_space<vmem>>, vector<1x128xf32>
    %c3_i32_114 = arith.constant 3 : i32
    %324 = arith.addi %308, %c3_i32_114 : i32
    %325 = arith.index_cast %324 : i32 to index
    %326 = memref.load %arg1[%325] : memref<64xi32, #tpu.memory_space<smem>>
    %327 = arith.index_cast %326 : i32 to index
    %c0_115 = arith.constant 0 : index
    %328 = vector.load %arg2[%327, %c0_115] : memref<50x128xf32, #tpu.memory_space<vmem>>, vector<1x128xf32>
    %c4_i32_116 = arith.constant 4 : i32
    %329 = arith.addi %308, %c4_i32_116 : i32
    %330 = arith.index_cast %329 : i32 to index
    %331 = memref.load %arg1[%330] : memref<64xi32, #tpu.memory_space<smem>>
    %332 = arith.index_cast %331 : i32 to index
    %c0_117 = arith.constant 0 : index
    %333 = vector.load %arg2[%332, %c0_117] : memref<50x128xf32, #tpu.memory_space<vmem>>, vector<1x128xf32>
    %c5_i32_118 = arith.constant 5 : i32
    %334 = arith.addi %308, %c5_i32_118 : i32
    %335 = arith.index_cast %334 : i32 to index
    %336 = memref.load %arg1[%335] : memref<64xi32, #tpu.memory_space<smem>>
    %337 = arith.index_cast %336 : i32 to index
    %c0_119 = arith.constant 0 : index
    %338 = vector.load %arg2[%337, %c0_119] : memref<50x128xf32, #tpu.memory_space<vmem>>, vector<1x128xf32>
    %c6_i32_120 = arith.constant 6 : i32
    %339 = arith.addi %308, %c6_i32_120 : i32
    %340 = arith.index_cast %339 : i32 to index
    %341 = memref.load %arg1[%340] : memref<64xi32, #tpu.memory_space<smem>>
    %342 = arith.index_cast %341 : i32 to index
    %c0_121 = arith.constant 0 : index
    %343 = vector.load %arg2[%342, %c0_121] : memref<50x128xf32, #tpu.memory_space<vmem>>, vector<1x128xf32>
    %c7_i32_122 = arith.constant 7 : i32
    %344 = arith.addi %308, %c7_i32_122 : i32
    %345 = arith.index_cast %344 : i32 to index
    %346 = memref.load %arg1[%345] : memref<64xi32, #tpu.memory_space<smem>>
    %347 = arith.index_cast %346 : i32 to index
    %c0_123 = arith.constant 0 : index
    %348 = vector.load %arg2[%347, %c0_123] : memref<50x128xf32, #tpu.memory_space<vmem>>, vector<1x128xf32>
    %349 = arith.maximumf %313, %318 : vector<1x128xf32>
    %350 = arith.maximumf %323, %328 : vector<1x128xf32>
    %351 = arith.maximumf %333, %338 : vector<1x128xf32>
    %352 = arith.maximumf %343, %348 : vector<1x128xf32>
    %353 = arith.maximumf %349, %350 : vector<1x128xf32>
    %354 = arith.maximumf %351, %352 : vector<1x128xf32>
    %355 = arith.maximumf %353, %354 : vector<1x128xf32>
    %356 = math.tanh %355 : vector<1x128xf32>
    %c6 = arith.constant 6 : index
    %c0_124 = arith.constant 0 : index
    %357 = vector.load %arg3[%c6, %c0_124] : memref<8x128xf32, #tpu.memory_space<vmem>>, vector<1x128xf32>
    tpu.vector_store %arg3[%c6, %c0_124], %356 {strides = array<i32>} : memref<8x128xf32, #tpu.memory_space<vmem>>, vector<1x128xf32>,
    %c7_i32_125 = arith.constant 7 : i32
    %358 = arith.addi %0, %c7_i32_125 : i32
    %c8_i32_126 = arith.constant 8 : i32
    %359 = arith.muli %358, %c8_i32_126 : i32
    %c0_i32_127 = arith.constant 0 : i32
    %360 = arith.addi %359, %c0_i32_127 : i32
    %361 = arith.index_cast %360 : i32 to index
    %362 = memref.load %arg1[%361] : memref<64xi32, #tpu.memory_space<smem>>
    %363 = arith.index_cast %362 : i32 to index
    %c0_128 = arith.constant 0 : index
    %364 = vector.load %arg2[%363, %c0_128] : memref<50x128xf32, #tpu.memory_space<vmem>>, vector<1x128xf32>
    %c1_i32_129 = arith.constant 1 : i32
    %365 = arith.addi %359, %c1_i32_129 : i32
    %366 = arith.index_cast %365 : i32 to index
    %367 = memref.load %arg1[%366] : memref<64xi32, #tpu.memory_space<smem>>
    %368 = arith.index_cast %367 : i32 to index
    %c0_130 = arith.constant 0 : index
    %369 = vector.load %arg2[%368, %c0_130] : memref<50x128xf32, #tpu.memory_space<vmem>>, vector<1x128xf32>
    %c2_i32_131 = arith.constant 2 : i32
    %370 = arith.addi %359, %c2_i32_131 : i32
    %371 = arith.index_cast %370 : i32 to index
    %372 = memref.load %arg1[%371] : memref<64xi32, #tpu.memory_space<smem>>
    %373 = arith.index_cast %372 : i32 to index
    %c0_132 = arith.constant 0 : index
    %374 = vector.load %arg2[%373, %c0_132] : memref<50x128xf32, #tpu.memory_space<vmem>>, vector<1x128xf32>
    %c3_i32_133 = arith.constant 3 : i32
    %375 = arith.addi %359, %c3_i32_133 : i32
    %376 = arith.index_cast %375 : i32 to index
    %377 = memref.load %arg1[%376] : memref<64xi32, #tpu.memory_space<smem>>
    %378 = arith.index_cast %377 : i32 to index
    %c0_134 = arith.constant 0 : index
    %379 = vector.load %arg2[%378, %c0_134] : memref<50x128xf32, #tpu.memory_space<vmem>>, vector<1x128xf32>
    %c4_i32_135 = arith.constant 4 : i32
    %380 = arith.addi %359, %c4_i32_135 : i32
    %381 = arith.index_cast %380 : i32 to index
    %382 = memref.load %arg1[%381] : memref<64xi32, #tpu.memory_space<smem>>
    %383 = arith.index_cast %382 : i32 to index
    %c0_136 = arith.constant 0 : index
    %384 = vector.load %arg2[%383, %c0_136] : memref<50x128xf32, #tpu.memory_space<vmem>>, vector<1x128xf32>
    %c5_i32_137 = arith.constant 5 : i32
    %385 = arith.addi %359, %c5_i32_137 : i32
    %386 = arith.index_cast %385 : i32 to index
    %387 = memref.load %arg1[%386] : memref<64xi32, #tpu.memory_space<smem>>
    %388 = arith.index_cast %387 : i32 to index
    %c0_138 = arith.constant 0 : index
    %389 = vector.load %arg2[%388, %c0_138] : memref<50x128xf32, #tpu.memory_space<vmem>>, vector<1x128xf32>
    %c6_i32_139 = arith.constant 6 : i32
    %390 = arith.addi %359, %c6_i32_139 : i32
    %391 = arith.index_cast %390 : i32 to index
    %392 = memref.load %arg1[%391] : memref<64xi32, #tpu.memory_space<smem>>
    %393 = arith.index_cast %392 : i32 to index
    %c0_140 = arith.constant 0 : index
    %394 = vector.load %arg2[%393, %c0_140] : memref<50x128xf32, #tpu.memory_space<vmem>>, vector<1x128xf32>
    %c7_i32_141 = arith.constant 7 : i32
    %395 = arith.addi %359, %c7_i32_141 : i32
    %396 = arith.index_cast %395 : i32 to index
    %397 = memref.load %arg1[%396] : memref<64xi32, #tpu.memory_space<smem>>
    %398 = arith.index_cast %397 : i32 to index
    %c0_142 = arith.constant 0 : index
    %399 = vector.load %arg2[%398, %c0_142] : memref<50x128xf32, #tpu.memory_space<vmem>>, vector<1x128xf32>
    %400 = arith.maximumf %364, %369 : vector<1x128xf32>
    %401 = arith.maximumf %374, %379 : vector<1x128xf32>
    %402 = arith.maximumf %384, %389 : vector<1x128xf32>
    %403 = arith.maximumf %394, %399 : vector<1x128xf32>
    %404 = arith.maximumf %400, %401 : vector<1x128xf32>
    %405 = arith.maximumf %402, %403 : vector<1x128xf32>
    %406 = arith.maximumf %404, %405 : vector<1x128xf32>
    %407 = math.tanh %406 : vector<1x128xf32>
    %c7 = arith.constant 7 : index
    %c0_143 = arith.constant 0 : index
    %408 = vector.load %arg3[%c7, %c0_143] : memref<8x128xf32, #tpu.memory_space<vmem>>, vector<1x128xf32>
    tpu.vector_store %arg3[%c7, %c0_143], %407 {strides = array<i32>} : memref<8x128xf32, #tpu.memory_space<vmem>>, vector<1x128xf32>,
    return
  }
  func.func @transform_0(%arg0: i32, %arg1: memref<64xi32, #tpu.memory_space<smem>>) -> (i32, i32) {
    %c0_i32 = arith.constant 0 : i32
    %c0_i32_0 = arith.constant 0 : i32
    %c0_i32_1 = arith.constant 0 : i32
    return %c0_i32, %c0_i32_0 : i32, i32
  }
  func.func @transform_1(%arg0: i32, %arg1: memref<64xi32, #tpu.memory_space<smem>>) -> (i32, i32) {
    %c0_i32 = arith.constant 0 : i32
    %c0_i32_0 = arith.constant 0 : i32
    return %arg0, %c0_i32 : i32, i32
  }
}

</mosaic_0001>

<llo_original>
// kernel: bow_encoder.1
$region0: #{bow_encoder.1}
  #allocation0 [shape = 'u32[]', space=smem, size = 0x4, offset = 0x4, fixed_abs, tag = 'smem constant byte address 0x4 - core index']
  #allocation1 [shape = 'u32[144,128]{1,0:T(1,128)}', space=vmem, size = 0x12000, scoped, tag = 'internal scratch']
  #allocation2 [shape = 's32[1]{0}', space=sflag, size = 0x4, scoped, tag = 'scoped memory for bow_encoder.1']
  #allocation3 [shape = 'u8[512]{0}', space=smem, size = 0x200, scoped, tag = 'prefetched SMEM operand 0']
  %s0 = inlined_call_operand.vmem [shape: s32[64], index: 0, kind: input, shape index: {}]
  %s1 = inlined_call_operand.hbm [shape: f32[50,128], index: 1, kind: input, shape index: {}]
  %s2 = inlined_call_operand.vmem [shape: f32[8,128], index: 2, kind: output, shape index: {}]
  %s3 = sld [smem:[#allocation0]]
  $region18: #{bow_encoder.1} parent=0
    _
  %s5 = ssub.s32 1, %s3
  %s6 = scalar_select 0, %s5, %s3
  %s7 = sshll.u32 %s0, 4
  %s8 = int_to_ptr.vmem [resolvable:$true] %s7
  %10 = dma.vmem_to_smem %s8, 16, [#allocation3], [#allocation2]
  %11 = dma.done [#allocation2], 16
  %12 = sfence
  $region1: #{bow_encoder.1} parent=0
    #allocation4 [shape = 'u8[28672]{0}', space=vmem, size = 0x7000, scoped, tag = 'input window, operand 1, single buffered']
    #allocation5 [shape = 's32[1]{0}', space=sflag, size = 0x4, scoped, tag = 'scoped memory for bow_encoder.1']
    %13 = vsyncpa [#allocation5], 0
    // Predicated region
    $region2: #{bow_encoder.1} parent=1 // pred_check
      _
    $region3: #{bow_encoder.1} parent=1 // pred_check_branch
      %15 = sbr.rel (0) target = $region5
    $region4: #{bow_encoder.1} parent=1 // pred_region
      %s17 = ssub.s32 896, 896
      %18 = vsyncadd [#allocation5], %s17
      %s19 = sshll.u32 [#allocation4], 4
      %s20 = int_to_ptr.vmem [resolvable:$true] %s19
      %25 = dma.hbm_to_vmem [thread:$0]  %s1, 896, %s20, [#allocation5], 128, 128, 8
    $region5: #{bow_encoder.1} parent=1 // pred_fallthru
      _
    // Predicated region
    $region6: #{bow_encoder.1} parent=1 // pred_check
      _
    $region7: #{bow_encoder.1} parent=1 // pred_check_branch
      %27 = sbr.rel (0) target = $region9
    $region8: #{bow_encoder.1} parent=1 // pred_region
      %28 = dma.done [#allocation5], 896
    $region9: #{bow_encoder.1} parent=1 // pred_fallthru
      _
    %s29 = smul.u32 0, 8
    %s30 = smul.u32 0, 64
    %s31 = sld [smem:[#allocation3 + %s30]]
    %s32 = scalar_lea.vmem [#allocation4], %s31
    %v33 = vld [vmem:[%s32] sm:$0x1]
    %s34 = sadd.s32 %s30, 1
    %s35 = sld [smem:[#allocation3 + %s34]]
    %s36 = scalar_lea.vmem [#allocation4], %s35
    %v37 = vld [vmem:[%s36] sm:$0x1]
    %s38 = sadd.s32 %s30, 2
    %s39 = sld [smem:[#allocation3 + %s38]]
    %s40 = scalar_lea.vmem [#allocation4], %s39
    %v41 = vld [vmem:[%s40] sm:$0x1]
    %s42 = sadd.s32 %s30, 3
    %s43 = sld [smem:[#allocation3 + %s42]]
    %s44 = scalar_lea.vmem [#allocation4], %s43
    %v45 = vld [vmem:[%s44] sm:$0x1]
    %s46 = sadd.s32 %s30, 4
    %s47 = sld [smem:[#allocation3 + %s46]]
    %s48 = scalar_lea.vmem [#allocation4], %s47
    %v49 = vld [vmem:[%s48] sm:$0x1]
    %s50 = sadd.s32 %s30, 5
    %s51 = sld [smem:[#allocation3 + %s50]]
    %s52 = scalar_lea.vmem [#allocation4], %s51
    %v53 = vld [vmem:[%s52] sm:$0x1]
    %s54 = sadd.s32 %s30, 6
    %s55 = sld [smem:[#allocation3 + %s54]]
    %s56 = scalar_lea.vmem [#allocation4], %s55
    %v57 = vld [vmem:[%s56] sm:$0x1]
    %s58 = sadd.s32 %s30, 7
    %s59 = sld [smem:[#allocation3 + %s58]]
    %s60 = scalar_lea.vmem [#allocation4], %s59
    %v61 = vld [vmem:[%s60] sm:$0x1]
    %v62 = vmax.f32 %v33, %v37
    %v63 = vmax.f32 %v41, %v45
    %v64 = vmax.f32 %v49, %v53
    %v65 = vmax.f32 %v57, %v61
    %v66 = vmax.f32 %v62, %v63
    %v67 = vmax.f32 %v64, %v65
    %v68 = vmax.f32 %v66, %v67
    %v69 = vtanh.pop %v68
    %70 = vst [vmem:[%s2] sm:$0x1] %v69
    %s71 = sadd.s32 %s29, 1
    %s72 = smul.u32 %s71, 8
    %s73 = sld [smem:[#allocation3 + %s72]]
    %s74 = scalar_lea.vmem [#allocation4], %s73
    %v75 = vld [vmem:[%s74] sm:$0x1]
    %s76 = sadd.s32 %s72, 1
    %s77 = sld [smem:[#allocation3 + %s76]]
    %s78 = scalar_lea.vmem [#allocation4], %s77
    %v79 = vld [vmem:[%s78] sm:$0x1]
    %s80 = sadd.s32 %s72, 2
    %s81 = sld [smem:[#allocation3 + %s80]]
    %s82 = scalar_lea.vmem [#allocation4], %s81
    %v83 = vld [vmem:[%s82] sm:$0x1]
    %s84 = sadd.s32 %s72, 3
    %s85 = sld [smem:[#allocation3 + %s84]]
    %s86 = scalar_lea.vmem [#allocation4], %s85
    %v87 = vld [vmem:[%s86] sm:$0x1]
    %s88 = sadd.s32 %s72, 4
    %s89 = sld [smem:[#allocation3 + %s88]]
    %s90 = scalar_lea.vmem [#allocation4], %s89
    %v91 = vld [vmem:[%s90] sm:$0x1]
    %s92 = sadd.s32 %s72, 5
    %s93 = sld [smem:[#allocation3 + %s92]]
    %s94 = scalar_lea.vmem [#allocation4], %s93
    %v95 = vld [vmem:[%s94] sm:$0x1]
    %s96 = sadd.s32 %s72, 6
    %s97 = sld [smem:[#allocation3 + %s96]]
    %s98 = scalar_lea.vmem [#allocation4], %s97
    %v99 = vld [vmem:[%s98] sm:$0x1]
    %s100 = sadd.s32 %s72, 7
    %s101 = sld [smem:[#allocation3 + %s100]]
    %s102 = scalar_lea.vmem [#allocation4], %s101
    %v103 = vld [vmem:[%s102] sm:$0x1]
    %v104 = vmax.f32 %v75, %v79
    %v105 = vmax.f32 %v83, %v87
    %v106 = vmax.f32 %v91, %v95
    %v107 = vmax.f32 %v99, %v103
    %v108 = vmax.f32 %v104, %v105
    %v109 = vmax.f32 %v106, %v107
    %v110 = vmax.f32 %v108, %v109
    %v111 = vtanh.pop %v110
    %112 = vst [vmem:[%s2 + $0x1] sm:$0x1] %v111
    %s113 = sadd.s32 %s29, 2
    %s114 = smul.u32 %s113, 8
    %s115 = sld [smem:[#allocation3 + %s114]]
    %s116 = scalar_lea.vmem [#allocation4], %s115
    %v117 = vld [vmem:[%s116] sm:$0x1]
    %s118 = sadd.s32 %s114, 1
    %s119 = sld [smem:[#allocation3 + %s118]]
    %s120 = scalar_lea.vmem [#allocation4], %s119
    %v121 = vld [vmem:[%s120] sm:$0x1]
    %s122 = sadd.s32 %s114, 2
    %s123 = sld [smem:[#allocation3 + %s122]]
    %s124 = scalar_lea.vmem [#allocation4], %s123
    %v125 = vld [vmem:[%s124] sm:$0x1]
    %s126 = sadd.s32 %s114, 3
    %s127 = sld [smem:[#allocation3 + %s126]]
    %s128 = scalar_lea.vmem [#allocation4], %s127
    %v129 = vld [vmem:[%s128] sm:$0x1]
    %s130 = sadd.s32 %s114, 4
    %s131 = sld [smem:[#allocation3 + %s130]]
    %s132 = scalar_lea.vmem [#allocation4], %s131
    %v133 = vld [vmem:[%s132] sm:$0x1]
    %s134 = sadd.s32 %s114, 5
    %s135 = sld [smem:[#allocation3 + %s134]]
    %s136 = scalar_lea.vmem [#allocation4], %s135
    %v137 = vld [vmem:[%s136] sm:$0x1]
    %s138 = sadd.s32 %s114, 6
    %s139 = sld [smem:[#allocation3 + %s138]]
    %s140 = scalar_lea.vmem [#allocation4], %s139
    %v141 = vld [vmem:[%s140] sm:$0x1]
    %s142 = sadd.s32 %s114, 7
    %s143 = sld [smem:[#allocation3 + %s142]]
    %s144 = scalar_lea.vmem [#allocation4], %s143
    %v145 = vld [vmem:[%s144] sm:$0x1]
    %v146 = vmax.f32 %v117, %v121
    %v147 = vmax.f32 %v125, %v129
    %v148 = vmax.f32 %v133, %v137
    %v149 = vmax.f32 %v141, %v145
    %v150 = vmax.f32 %v146, %v147
    %v151 = vmax.f32 %v148, %v149
    %v152 = vmax.f32 %v150, %v151
    %v153 = vtanh.pop %v152
    %154 = vst [vmem:[%s2 + $0x2] sm:$0x1] %v153
    %s155 = sadd.s32 %s29, 3
    %s156 = smul.u32 %s155, 8
    %s157 = sld [smem:[#allocation3 + %s156]]
    %s158 = scalar_lea.vmem [#allocation4], %s157
    %v159 = vld [vmem:[%s158] sm:$0x1]
    %s160 = sadd.s32 %s156, 1
    %s161 = sld [smem:[#allocation3 + %s160]]
    %s162 = scalar_lea.vmem [#allocation4], %s161
    %v163 = vld [vmem:[%s162] sm:$0x1]
    %s164 = sadd.s32 %s156, 2
    %s165 = sld [smem:[#allocation3 + %s164]]
    %s166 = scalar_lea.vmem [#allocation4], %s165
    %v167 = vld [vmem:[%s166] sm:$0x1]
    %s168 = sadd.s32 %s156, 3
    %s169 = sld [smem:[#allocation3 + %s168]]
    %s170 = scalar_lea.vmem [#allocation4], %s169
    %v171 = vld [vmem:[%s170] sm:$0x1]
    %s172 = sadd.s32 %s156, 4
    %s173 = sld [smem:[#allocation3 + %s172]]
    %s174 = scalar_lea.vmem [#allocation4], %s173
    %v175 = vld [vmem:[%s174] sm:$0x1]
    %s176 = sadd.s32 %s156, 5
    %s177 = sld [smem:[#allocation3 + %s176]]
    %s178 = scalar_lea.vmem [#allocation4], %s177
    %v179 = vld [vmem:[%s178] sm:$0x1]
    %s180 = sadd.s32 %s156, 6
    %s181 = sld [smem:[#allocation3 + %s180]]
    %s182 = scalar_lea.vmem [#allocation4], %s181
    %v183 = vld [vmem:[%s182] sm:$0x1]
    %s184 = sadd.s32 %s156, 7
    %s185 = sld [smem:[#allocation3 + %s184]]
    %s186 = scalar_lea.vmem [#allocation4], %s185
    %v187 = vld [vmem:[%s186] sm:$0x1]
    %v188 = vmax.f32 %v159, %v163
    %v189 = vmax.f32 %v167, %v171
    %v190 = vmax.f32 %v175, %v179
    %v191 = vmax.f32 %v183, %v187
    %v192 = vmax.f32 %v188, %v189
    %v193 = vmax.f32 %v190, %v191
    %v194 = vmax.f32 %v192, %v193
    %v195 = vtanh.pop %v194
    %196 = vst [vmem:[%s2 + $0x3] sm:$0x1] %v195
    %s197 = sadd.s32 %s29, 4
    %s198 = smul.u32 %s197, 8
    %s199 = sld [smem:[#allocation3 + %s198]]
    %s200 = scalar_lea.vmem [#allocation4], %s199
    %v201 = vld [vmem:[%s200] sm:$0x1]
    %s202 = sadd.s32 %s198, 1
    %s203 = sld [smem:[#allocation3 + %s202]]
    %s204 = scalar_lea.vmem [#allocation4], %s203
    %v205 = vld [vmem:[%s204] sm:$0x1]
    %s206 = sadd.s32 %s198, 2
    %s207 = sld [smem:[#allocation3 + %s206]]
    %s208 = scalar_lea.vmem [#allocation4], %s207
    %v209 = vld [vmem:[%s208] sm:$0x1]
    %s210 = sadd.s32 %s198, 3
    %s211 = sld [smem:[#allocation3 + %s210]]
    %s212 = scalar_lea.vmem [#allocation4], %s211
    %v213 = vld [vmem:[%s212] sm:$0x1]
    %s214 = sadd.s32 %s198, 4
    %s215 = sld [smem:[#allocation3 + %s214]]
    %s216 = scalar_lea.vmem [#allocation4], %s215
    %v217 = vld [vmem:[%s216] sm:$0x1]
    %s218 = sadd.s32 %s198, 5
    %s219 = sld [smem:[#allocation3 + %s218]]
    %s220 = scalar_lea.vmem [#allocation4], %s219
    %v221 = vld [vmem:[%s220] sm:$0x1]
    %s222 = sadd.s32 %s198, 6
    %s223 = sld [smem:[#allocation3 + %s222]]
    %s224 = scalar_lea.vmem [#allocation4], %s223
    %v225 = vld [vmem:[%s224] sm:$0x1]
    %s226 = sadd.s32 %s198, 7
    %s227 = sld [smem:[#allocation3 + %s226]]
    %s228 = scalar_lea.vmem [#allocation4], %s227
    %v229 = vld [vmem:[%s228] sm:$0x1]
    %v230 = vmax.f32 %v201, %v205
    %v231 = vmax.f32 %v209, %v213
    %v232 = vmax.f32 %v217, %v221
    %v233 = vmax.f32 %v225, %v229
    %v234 = vmax.f32 %v230, %v231
    %v235 = vmax.f32 %v232, %v233
    %v236 = vmax.f32 %v234, %v235
    %v237 = vtanh.pop %v236
    %238 = vst [vmem:[%s2 + $0x4] sm:$0x1] %v237
    %s239 = sadd.s32 %s29, 5
    %s240 = smul.u32 %s239, 8
    %s241 = sld [smem:[#allocation3 + %s240]]
    %s242 = scalar_lea.vmem [#allocation4], %s241
    %v243 = vld [vmem:[%s242] sm:$0x1]
    %s244 = sadd.s32 %s240, 1
    %s245 = sld [smem:[#allocation3 + %s244]]
    %s246 = scalar_lea.vmem [#allocation4], %s245
    %v247 = vld [vmem:[%s246] sm:$0x1]
    %s248 = sadd.s32 %s240, 2
    %s249 = sld [smem:[#allocation3 + %s248]]
    %s250 = scalar_lea.vmem [#allocation4], %s249
    %v251 = vld [vmem:[%s250] sm:$0x1]
    %s252 = sadd.s32 %s240, 3
    %s253 = sld [smem:[#allocation3 + %s252]]
    %s254 = scalar_lea.vmem [#allocation4], %s253
    %v255 = vld [vmem:[%s254] sm:$0x1]
    %s256 = sadd.s32 %s240, 4
    %s257 = sld [smem:[#allocation3 + %s256]]
    %s258 = scalar_lea.vmem [#allocation4], %s257
    %v259 = vld [vmem:[%s258] sm:$0x1]
    %s260 = sadd.s32 %s240, 5
    %s261 = sld [smem:[#allocation3 + %s260]]
    %s262 = scalar_lea.vmem [#allocation4], %s261
    %v263 = vld [vmem:[%s262] sm:$0x1]
    %s264 = sadd.s32 %s240, 6
    %s265 = sld [smem:[#allocation3 + %s264]]
    %s266 = scalar_lea.vmem [#allocation4], %s265
    %v267 = vld [vmem:[%s266] sm:$0x1]
    %s268 = sadd.s32 %s240, 7
    %s269 = sld [smem:[#allocation3 + %s268]]
    %s270 = scalar_lea.vmem [#allocation4], %s269
    %v271 = vld [vmem:[%s270] sm:$0x1]
    %v272 = vmax.f32 %v243, %v247
    %v273 = vmax.f32 %v251, %v255
    %v274 = vmax.f32 %v259, %v263
    %v275 = vmax.f32 %v267, %v271
    %v276 = vmax.f32 %v272, %v273
    %v277 = vmax.f32 %v274, %v275
    %v278 = vmax.f32 %v276, %v277
    %v279 = vtanh.pop %v278
    %280 = vst [vmem:[%s2 + $0x5] sm:$0x1] %v279
    %s281 = sadd.s32 %s29, 6
    %s282 = smul.u32 %s281, 8
    %s283 = sld [smem:[#allocation3 + %s282]]
    %s284 = scalar_lea.vmem [#allocation4], %s283
    %v285 = vld [vmem:[%s284] sm:$0x1]
    %s286 = sadd.s32 %s282, 1
    %s287 = sld [smem:[#allocation3 + %s286]]
    %s288 = scalar_lea.vmem [#allocation4], %s287
    %v289 = vld [vmem:[%s288] sm:$0x1]
    %s290 = sadd.s32 %s282, 2
    %s291 = sld [smem:[#allocation3 + %s290]]
    %s292 = scalar_lea.vmem [#allocation4], %s291
    %v293 = vld [vmem:[%s292] sm:$0x1]
    %s294 = sadd.s32 %s282, 3
    %s295 = sld [smem:[#allocation3 + %s294]]
    %s296 = scalar_lea.vmem [#allocation4], %s295
    %v297 = vld [vmem:[%s296] sm:$0x1]
    %s298 = sadd.s32 %s282, 4
    %s299 = sld [smem:[#allocation3 + %s298]]
    %s300 = scalar_lea.vmem [#allocation4], %s299
    %v301 = vld [vmem:[%s300] sm:$0x1]
    %s302 = sadd.s32 %s282, 5
    %s303 = sld [smem:[#allocation3 + %s302]]
    %s304 = scalar_lea.vmem [#allocation4], %s303
    %v305 = vld [vmem:[%s304] sm:$0x1]
    %s306 = sadd.s32 %s282, 6
    %s307 = sld [smem:[#allocation3 + %s306]]
    %s308 = scalar_lea.vmem [#allocation4], %s307
    %v309 = vld [vmem:[%s308] sm:$0x1]
    %s310 = sadd.s32 %s282, 7
    %s311 = sld [smem:[#allocation3 + %s310]]
    %s312 = scalar_lea.vmem [#allocation4], %s311
    %v313 = vld [vmem:[%s312] sm:$0x1]
    %v314 = vmax.f32 %v285, %v289
    %v315 = vmax.f32 %v293, %v297
    %v316 = vmax.f32 %v301, %v305
    %v317 = vmax.f32 %v309, %v313
    %v318 = vmax.f32 %v314, %v315
    %v319 = vmax.f32 %v316, %v317
    %v320 = vmax.f32 %v318, %v319
    %v321 = vtanh.pop %v320
    %322 = vst [vmem:[%s2 + $0x6] sm:$0x1] %v321
    %s323 = sadd.s32 %s29, 7
    %s324 = smul.u32 %s323, 8
    %s325 = sld [smem:[#allocation3 + %s324]]
    %s326 = scalar_lea.vmem [#allocation4], %s325
    %v327 = vld [vmem:[%s326] sm:$0x1]
    %s328 = sadd.s32 %s324, 1
    %s329 = sld [smem:[#allocation3 + %s328]]
    %s330 = scalar_lea.vmem [#allocation4], %s329
    %v331 = vld [vmem:[%s330] sm:$0x1]
    %s332 = sadd.s32 %s324, 2
    %s333 = sld [smem:[#allocation3 + %s332]]
    %s334 = scalar_lea.vmem [#allocation4], %s333
    %v335 = vld [vmem:[%s334] sm:$0x1]
    %s336 = sadd.s32 %s324, 3
    %s337 = sld [smem:[#allocation3 + %s336]]
    %s338 = scalar_lea.vmem [#allocation4], %s337
    %v339 = vld [vmem:[%s338] sm:$0x1]
    %s340 = sadd.s32 %s324, 4
    %s341 = sld [smem:[#allocation3 + %s340]]
    %s342 = scalar_lea.vmem [#allocation4], %s341
    %v343 = vld [vmem:[%s342] sm:$0x1]
    %s344 = sadd.s32 %s324, 5
    %s345 = sld [smem:[#allocation3 + %s344]]
    %s346 = scalar_lea.vmem [#allocation4], %s345
    %v347 = vld [vmem:[%s346] sm:$0x1]
    %s348 = sadd.s32 %s324, 6
    %s349 = sld [smem:[#allocation3 + %s348]]
    %s350 = scalar_lea.vmem [#allocation4], %s349
    %v351 = vld [vmem:[%s350] sm:$0x1]
    %s352 = sadd.s32 %s324, 7
    %s353 = sld [smem:[#allocation3 + %s352]]
    %s354 = scalar_lea.vmem [#allocation4], %s353
    %v355 = vld [vmem:[%s354] sm:$0x1]
    %v356 = vmax.f32 %v327, %v331
    %v357 = vmax.f32 %v335, %v339
    %v358 = vmax.f32 %v343, %v347
    %v359 = vmax.f32 %v351, %v355
    %v360 = vmax.f32 %v356, %v357
    %v361 = vmax.f32 %v358, %v359
    %v362 = vmax.f32 %v360, %v361
    %v363 = vtanh.pop %v362
    %364 = vst [vmem:[%s2 + $0x7] sm:$0x1] %v363
    // Predicated region
    $region10: #{bow_encoder.1} parent=1 // pred_check
      _
    $region11: #{bow_encoder.1} parent=1 // pred_check_branch
      %366 = sbr.rel (0) target = $region13
    $region12: #{bow_encoder.1} parent=1 // pred_region
      _
    $region13: #{bow_encoder.1} parent=1 // pred_fallthru
      _
    // Predicated region
    $region14: #{bow_encoder.1} parent=1 // pred_check
      _
    $region15: #{bow_encoder.1} parent=1 // pred_check_branch
      %368 = sbr.rel (0) target = $region17
    $region16: #{bow_encoder.1} parent=1 // pred_region
      _
    $region17: #{bow_encoder.1} parent=1 // pred_fallthru
      _
    %369 = vsyncpa [#allocation5], 1

</llo_original>
